<compile_context>
chip_gen: v5e
topology: v5e:2x2
jax: 0.10.0
libtpu: 0.0.40
codegen_flags: <defaults>
</compile_context>

<pallas_src>
import jax
import jax.numpy as jnp
from jax import lax
from jax.experimental import pallas as pl
from jax.experimental.pallas import tpu as pltpu

_LANES = 128
# Minimum sublane multiple by dtype itemsize (sub-32-bit dtypes pack along
# sublanes: bf16/fp16 -> (16,128) tiles, int8/fp8 -> (32,128)).
_SUBLANES_BY_ITEMSIZE = {4: 8, 2: 16, 1: 32}
# Elements per chunk for the manual-DMA (ragged) path: 128K elems = 512 KiB f32.
_RAGGED_CHUNK_ELEMS = 128 * 1024


def _sublane_multiple(dtype) -> int:
    return _SUBLANES_BY_ITEMSIZE.get(jnp.dtype(dtype).itemsize, 8)


def _vmem_budget():
    """(per-block byte budget, vmem_limit_bytes) chosen per TPU generation."""
    try:
        vmem_bytes = pltpu.get_tpu_info().vmem_capacity_bytes
    except Exception:
        vmem_bytes = 64 << 20  # conservative (v7x-sized) fallback
    if vmem_bytes >= (128 << 20):
        # v5e / v6e: 128 MiB VMEM, lowest HBM BW -> bigger blocks amortize the
        # ~0.35us per-step overhead further.
        return 8 << 20, 96 << 20
    # v7x: 64 MiB VMEM per TensorCore -> smaller cap, conservative limit.
    return 4 << 20, 48 << 20


# ---------------------------------------------------------------------------
# Aligned path: lane-dense (rows, 128) slab, BlockSpec-pipelined copy.
# ---------------------------------------------------------------------------
def _identity_copy_kernel(x_ref, o_ref):
    # Pure pass-through (BaseNet defines no computation of its own).
    # Full-tile, lane-dense load/store -> unmasked vld/vst.  The kernel is
    # purely DMA/HBM-bound, so the body is deliberately a single copy.
    o_ref[...] = x_ref[...]


def _aligned_identity(flat, total, dtype):
    itemsize = jnp.dtype(dtype).itemsize
    sub = _sublane_multiple(dtype)
    rows = total // _LANES  # multiple of `sub` by construction of this path
    block_budget, vmem_limit = _vmem_budget()

    # Byte-based block sizing (constant per-block DMA size across dtypes).
    max_block_rows = max(sub, (block_budget // (_LANES * itemsize)) // sub * sub)
    block_rows = min(rows, max_block_rows)
    # Force >= 2 grid steps for inputs >= 2 MiB: shards the grid across v7x's
    # two TensorCores and lets the pipeline overlap; one extra ~0.35us step
    # elsewhere (negligible).
    if total * itemsize >= (2 << 20):
        half_rows = pl.cdiv(pl.cdiv(rows, 2), sub) * sub
        block_rows = min(block_rows, half_rows)
    grid_rows = pl.cdiv(rows, block_rows)

    slab = flat.reshape(rows, _LANES)  # metadata-only reshape (same layout)
    out = pl.pallas_call(
        _identity_copy_kernel,
        out_shape=jax.ShapeDtypeStruct((rows, _LANES), dtype),
        grid=(grid_rows,),
        in_specs=[pl.BlockSpec((block_rows, _LANES), lambda i: (i, 0))],
        out_specs=pl.BlockSpec((block_rows, _LANES), lambda i: (i, 0)),
        compiler_params=pltpu.CompilerParams(
            dimension_semantics=("parallel",),
            vmem_limit_bytes=vmem_limit,
        ),
        cost_estimate=pl.CostEstimate(
            flops=0, transcendentals=0, bytes_accessed=2 * total * itemsize
        ),
    )(slab)
    return out.reshape(-1)


# ---------------------------------------------------------------------------
# Ragged path: manual DMA through VMEM, no wrapper pad / slice needed.
# ---------------------------------------------------------------------------
def _make_ragged_kernel(n_full, chunk, tail):
    def kernel(x_hbm, o_hbm, vbuf, in_sem, out_sem):
        def copy_span(start, size):
            view = vbuf.at[pl.ds(0, size)]
            cin = pltpu.make_async_copy(x_hbm.at[pl.ds(start, size)], view, in_sem)
            cin.start()
            cin.wait()
            cout = pltpu.make_async_copy(view, o_hbm.at[pl.ds(start, size)], out_sem)
            cout.start()
            cout.wait()

        if n_full:
            def body(c, carry):
                copy_span(pl.multiple_of(c * chunk, chunk), chunk)
                return carry

            lax.fori_loop(0, n_full, body, 0)
        if tail:
            copy_span(n_full * chunk, tail)

    return kernel


def _ragged_identity(flat, total, dtype):
    itemsize = jnp.dtype(dtype).itemsize
    chunk = _RAGGED_CHUNK_ELEMS
    n_full = total // chunk
    tail = total - n_full * chunk
    buf_elems = chunk if n_full else tail

    kernel = _make_ragged_kernel(n_full, chunk, tail)
    return pl.pallas_call(
        kernel,
        out_shape=jax.ShapeDtypeStruct((total,), dtype),
        in_specs=[pl.BlockSpec(memory_space=pl.ANY)],
        out_specs=pl.BlockSpec(memory_space=pl.ANY),
        scratch_shapes=[
            pltpu.VMEM((buf_elems,), dtype),
            pltpu.SemaphoreType.DMA,
            pltpu.SemaphoreType.DMA,
        ],
        compiler_params=pltpu.CompilerParams(vmem_limit_bytes=32 << 20),
        cost_estimate=pl.CostEstimate(
            flops=0, transcendentals=0, bytes_accessed=2 * total * itemsize
        ),
    )(flat)


# ---------------------------------------------------------------------------
# Forward wrapper.
# ---------------------------------------------------------------------------
@jax.jit
def base_net_forward(x: jax.Array) -> jax.Array:
    """Pallas 'forward' for BaseNet: identity over an arbitrary-shaped tensor."""
    orig_shape = x.shape
    dtype = x.dtype
    total = x.size
    if total == 0:
        return x

    flat = x.reshape(-1)
    sub = _sublane_multiple(dtype)
    if total % (_LANES * sub) == 0:
        out = _aligned_identity(flat, total, dtype)
    else:
        out = _ragged_identity(flat, total, dtype)
    return out.reshape(orig_shape)


class BaseNetPallas:
    """Mirror of the PyTorch BaseNet: no params, no mask, identity plumbing."""

    def __init__(self):
        self.mask = None
        self.model = None

    def forward(self, x):
        # The abstract PyTorch forward raises NotImplementedError; here we run
        # the identity Pallas kernel so the TPU path is exercised end-to-end.
        return base_net_forward(x)

    def args_dict(self):
        model_args = {}
        return model_args


if __name__ == "__main__":
    key = jax.random.PRNGKey(0)
    net = BaseNetPallas()

    # Small NCHW input consistent with a conv-style BaseNet subclass.
    # 2*4*16*16 = 2048 elements -> aligned fast path (no padding, no slicing).
    x = jax.random.normal(key, (2, 4, 16, 16), dtype=jnp.float32)
    y = jax.block_until_ready(net.forward(x))
    assert y.shape == x.shape and y.dtype == x.dtype
    assert bool(jnp.array_equal(y, x))

    # Packed dtype through the aligned path (16-sublane tiles for bf16).
    xb = x.astype(jnp.bfloat16)
    yb = jax.block_until_ready(net.forward(xb))
    assert yb.shape == xb.shape and yb.dtype == xb.dtype
    assert bool(jnp.array_equal(yb, xb))

    # Ragged element count -> in-kernel manual-DMA path (no wrapper pad/slice).
    xr = jax.random.normal(jax.random.PRNGKey(0), (3, 5, 7), dtype=jnp.float32)
    yr = jax.block_until_ready(net.forward(xr))
    assert yr.shape == xr.shape and yr.dtype == xr.dtype
    assert bool(jnp.array_equal(yr, xr))

    assert net.args_dict() == {}
    print("KERNEL_OK")
</pallas_src>

<mosaic_0001>
module attributes {stable_mosaic.version = 11 : i64} {
  func.func @_identity_copy_kernel(%arg0: i32, %arg1: memref<16x128xf32, #tpu.memory_space<vmem>>, %arg2: memref<16x128xf32, #tpu.memory_space<vmem>>) attributes {dimension_semantics = [#tpu.dimension_semantics<parallel>], iteration_bounds = array<i64: 1>, scalar_prefetch = 0 : i64, scratch_operands = 0 : i64, tpu.core_type = #tpu.core_type<tc>, window_params = [{transform_indices = @transform_0, window_bounds = array<i64: 16, 128>}, {transform_indices = @transform_1, window_bounds = array<i64: 16, 128>}]} {
    %c0 = arith.constant 0 : index
    %c0_0 = arith.constant 0 : index
    %0 = vector.load %arg1[%c0, %c0_0] : memref<16x128xf32, #tpu.memory_space<vmem>>, vector<16x128xf32>
    %c0_1 = arith.constant 0 : index
    %c0_2 = arith.constant 0 : index
    %1 = vector.load %arg2[%c0_1, %c0_2] : memref<16x128xf32, #tpu.memory_space<vmem>>, vector<16x128xf32>
    tpu.vector_store %arg2[%c0_1, %c0_2], %0 {strides = array<i32>} : memref<16x128xf32, #tpu.memory_space<vmem>>, vector<16x128xf32>,
    return
  }
  func.func @transform_0(%arg0: i32) -> (i32, i32) {
    %c0_i32 = arith.constant 0 : i32
    %c0_i32_0 = arith.constant 0 : i32
    return %arg0, %c0_i32 : i32, i32
  }
  func.func @transform_1(%arg0: i32) -> (i32, i32) {
    %c0_i32 = arith.constant 0 : i32
    %c0_i32_0 = arith.constant 0 : i32
    return %arg0, %c0_i32 : i32, i32
  }
}

</mosaic_0001>

<llo_original>
// kernel: base_net_forward.1
$region0: #{base_net_forward.1}
  #allocation0 [shape = 'u32[]', space=smem, size = 0x4, offset = 0x4, fixed_abs, tag = 'smem constant byte address 0x4 - core index']
  #allocation1 [shape = 'u32[72,128]{1,0:T(1,128)}', space=vmem, size = 0x9000, scoped, tag = 'internal scratch']
  %s0 = inlined_call_operand.vmem [shape: f32[16,128], index: 0, kind: input, shape index: {}]
  %s1 = inlined_call_operand.vmem [shape: f32[16,128], index: 1, kind: output, shape index: {}]
  %s2 = sld [smem:[#allocation0]]
  $region14: #{base_net_forward.1} parent=0
    _
  %s4 = ssub.s32 1, %s2
  %s5 = scalar_select 0, %s4, %s2
  // Predicated region
  $region2: #{base_net_forward.1} parent=0 // pred_check
    _
  $region3: #{base_net_forward.1} parent=0 // pred_check_branch
    %7 = sbr.rel (0) target = $region5
  $region4: #{base_net_forward.1} parent=0 // pred_region
    _
  $region5: #{base_net_forward.1} parent=0 // pred_fallthru
    _
  %v8 = vld [vmem:[%s0] sm:$0xff]
  %v9 = vld [vmem:[%s0 + $0x8] sm:$0xff]
  %10 = vst [vmem:[%s1] sm:$0xff] %v8
  %11 = vst [vmem:[%s1 + $0x8] sm:$0xff] %v9
  // Predicated region
  $region6: #{base_net_forward.1} parent=0 // pred_check
    _
  $region7: #{base_net_forward.1} parent=0 // pred_check_branch
    %13 = sbr.rel (0) target = $region9
  $region8: #{base_net_forward.1} parent=0 // pred_region
    _
  $region9: #{base_net_forward.1} parent=0 // pred_fallthru
    _
  // Predicated region
  $region10: #{base_net_forward.1} parent=0 // pred_check
    _
  $region11: #{base_net_forward.1} parent=0 // pred_check_branch
    %15 = sbr.rel (0) target = $region13
  $region12: #{base_net_forward.1} parent=0 // pred_region
    _
  $region13: #{base_net_forward.1} parent=0 // pred_fallthru
    _

</llo_original>
